<compile_context>
chip_gen: v7x
topology: tpu7x:2x2x1
jax: 0.10.0
libtpu: 0.0.40
codegen_flags: <defaults>
</compile_context>

<pallas_src>
import jax
import jax.numpy as jnp
from jax.experimental import pallas as pl
from jax.experimental.pallas import tpu as pltpu


def _round_up(x, m):
    return ((x + m - 1) // m) * m


def _pick_tile_128(padded_dim, cap):
    """Largest multiple of 128 <= cap that divides padded_dim.
    padded_dim is a multiple of 128, so 128 always works."""
    t = max(128, min(cap, padded_dim))
    t -= t % 128
    while padded_dim % t:
        t -= 128
    return t


# ---------------------------------------------------------------------------
# Pallas kernel: y = x_sel @ W^T + b
#   - o_ref is the accumulator (VMEM-resident across the K grid axis)
#   - bf16 operands on the MXU, f32 accumulation
# ---------------------------------------------------------------------------
def _condensed_linear_kernel(x_ref, wt_ref, b_ref, o_ref):
    # x_ref : (tm, tk) bf16   gathered activation tile
    # wt_ref: (tk, tn) bf16   condensed weight tile (pre-transposed (K, N))
    # b_ref : (1,  tn) f32    bias tile
    # o_ref : (tm, tn) f32    output tile == accumulator (same block for all k)
    @pl.when(pl.program_id(2) == 0)
    def _init():
        # Bias folded into the accumulator init -> added exactly once.
        o_ref[...] = jnp.broadcast_to(b_ref[...], o_ref.shape)

    o_ref[...] += jnp.dot(x_ref[...], wt_ref[...],
                          preferred_element_type=jnp.float32)


def condensed_linear_pallas(x_sel, w_t_pad, b_pad, n_out,
                            tm_cap=256, tn_cap=512, tk_cap=2048):
    """x_sel: (B, Kp) bf16 (already gathered + K-padded),
    w_t_pad: (Kp, Np) bf16, b_pad: (1, Np) f32  ->  (B, n_out) f32."""
    B, Kp = x_sel.shape
    Kp_w, Np = w_t_pad.shape
    assert Kp == Kp_w

    tm = min(tm_cap, _round_up(B, 16))      # bf16 packs 16 sublanes / vreg
    tn = _pick_tile_128(Np, tn_cap)
    tk = _pick_tile_128(Kp, tk_cap)

    grid = (pl.cdiv(B, tm), Np // tn, Kp // tk)

    return pl.pallas_call(
        _condensed_linear_kernel,
        out_shape=jax.ShapeDtypeStruct((B, n_out), jnp.float32),
        grid_spec=pltpu.PrefetchScalarGridSpec(
            num_scalar_prefetch=0,
            grid=grid,
            in_specs=[
                pl.BlockSpec((tm, tk), lambda i, j, k: (i, k)),
                pl.BlockSpec((tk, tn), lambda i, j, k: (k, j)),
                pl.BlockSpec((1, tn), lambda i, j, k: (0, j)),
            ],
            out_specs=pl.BlockSpec((tm, tn), lambda i, j, k: (i, j)),
        ),
        compiler_params=pltpu.CompilerParams(
            dimension_semantics=("parallel", "parallel", "arbitrary"),
            vmem_limit_bytes=32 * 1024 * 1024),
    )(x_sel, w_t_pad, b_pad)


# ---------------------------------------------------------------------------
# CondensingLinear: parameter construction (mirrors the PyTorch __init__)
# ---------------------------------------------------------------------------
class CondensingLinearJAX:
    def __init__(self, model_weight, model_bias, drop_rate=0.5,
                 tm_cap=256, tn_cap=512, tk_cap=2048):
        # model_weight: (out_features, in_full), model_bias: (out_features,)
        out_f, in_full = model_weight.shape
        self.in_features = int(in_full * drop_rate)
        self.out_features = out_f
        self._caps = (tm_cap, tn_cap, tk_cap)

        # _, index = model.weight.abs().sum(0).sort(); keep the tail (largest).
        col_sums = jnp.abs(model_weight).sum(axis=0)          # (in_full,)
        keep = jnp.argsort(col_sums)[in_full - self.in_features:]
        # Sorted kept-column index: a monotone gather is DMA-friendlier, and
        # since the SAME permutation is applied to x columns and W columns,
        # the linear output is unchanged.
        self.index = jnp.sort(keep).astype(jnp.int32)         # (K,)

        K, N = self.in_features, self.out_features
        Kp = _round_up(K, 128)
        Np = _round_up(N, 128)

        # Pad the gather index to Kp with a valid dummy column (0).  The
        # matching weight rows are zero, so the padded columns contribute
        # exactly 0 -- this fuses the K-padding into the gather itself.
        self.index_pad = jnp.concatenate(
            [self.index, jnp.zeros((Kp - K,), jnp.int32)])    # (Kp,)

        # Condensed parameters stored in kernel-ready layout ONCE at init:
        #   weight pre-transposed to (K, N), zero-padded to (Kp, Np), bf16;
        #   bias as (1, Np) f32 (added into the f32 accumulator).
        w_cond = model_weight[:, self.index]                  # (N, K) f32
        w_t = jnp.zeros((Kp, Np), jnp.float32).at[:K, :N].set(w_cond.T)
        # TODO(synk): optionally quantize the condensed weight (int8 on
        # v5e/v6e, fp8 on v7x) to halve the dominant weight HBM stream.
        self.w_t = w_t.astype(jnp.bfloat16)                   # (Kp, Np) bf16
        self.bias = jnp.zeros((1, Np), jnp.float32).at[0, :N].set(model_bias)

        # Unpadded f32 copies kept for reference checks.
        self.weight = w_cond                                  # (N, K) f32
        self.bias_f32 = model_bias                            # (N,)  f32

        self._fwd = jax.jit(self._forward)

    def _forward(self, x):
        # Fused gather + K-pad + bf16 cast: one XLA gather that writes bf16,
        # no separate pad/cast materialization of the activations.
        # TODO(synk): fully fuse the gather into the kernel (scalar-prefetch
        # the sorted index into SMEM + contiguous-run DMAs from x in HBM).
        x_sel = jnp.take(x, self.index_pad, axis=1).astype(jnp.bfloat16)
        tm_cap, tn_cap, tk_cap = self._caps
        return condensed_linear_pallas(x_sel, self.w_t, self.bias,
                                       self.out_features,
                                       tm_cap=tm_cap, tn_cap=tn_cap,
                                       tk_cap=tk_cap)

    def __call__(self, x):
        return self._fwd(x)


# ---------------------------------------------------------------------------
# Main
# ---------------------------------------------------------------------------
if __name__ == "__main__":
    key = jax.random.PRNGKey(0)

    def run_case(key, batch, in_full, out_f, drop_rate, caps):
        k_w, k_b, k_x = jax.random.split(key, 3)
        model_weight = jax.random.normal(
            k_w, (out_f, in_full), jnp.float32) * 0.1
        model_bias = jax.random.normal(k_b, (out_f,), jnp.float32) * 0.1
        x = jax.random.normal(k_x, (batch, in_full), jnp.float32)

        layer = CondensingLinearJAX(model_weight, model_bias,
                                    drop_rate=drop_rate,
                                    tm_cap=caps[0], tn_cap=caps[1],
                                    tk_cap=caps[2])
        y = jax.block_until_ready(layer(x))

        # Pure-JAX f32 reference of the same forward pass.
        x_sel_ref = jnp.take(x, layer.index, axis=1)
        y_ref = x_sel_ref @ layer.weight.T + layer.bias_f32

        assert y.shape == (batch, out_f)
        assert jnp.allclose(y, y_ref, atol=3e-2, rtol=3e-2), (
            float(jnp.max(jnp.abs(y - y_ref))))
        return True

    k1, k2 = jax.random.split(key)

    # Small demo shape consistent with the module (single grid step,
    # partial M/N blocks exercised by the clipped writeback path).
    run_case(k1, batch=4, in_full=32, out_f=8, drop_rate=0.5,
             caps=(256, 512, 2048))

    # Larger shape with small tile caps to exercise the multi-step K
    # reduction (accumulate into o_ref), multiple N tiles and a ragged batch
    # (partial last M block).
    run_case(k2, batch=20, in_full=768, out_f=160, drop_rate=0.5,
             caps=(16, 128, 128))

    print("KERNEL_OK")
</pallas_src>

<mosaic_0001>
module attributes {stable_mosaic.version = 11 : i64} {
  func.func @_condensed_linear_kernel(%arg0: i32, %arg1: i32, %arg2: i32, %arg3: memref<16x128xbf16, #tpu.memory_space<vmem>>, %arg4: memref<128x128xbf16, #tpu.memory_space<vmem>>, %arg5: memref<1x128xf32, #tpu.memory_space<vmem>>, %arg6: memref<16x128xf32, #tpu.memory_space<vmem>>) attributes {dimension_semantics = [#tpu.dimension_semantics<parallel>, #tpu.dimension_semantics<parallel>, #tpu.dimension_semantics<arbitrary>], iteration_bounds = array<i64: 1, 1, 1>, scalar_prefetch = 0 : i64, scratch_operands = 0 : i64, tpu.core_type = #tpu.core_type<tc>, window_params = [{transform_indices = @transform_0, window_bounds = array<i64: 16, 128>}, {transform_indices = @transform_1, window_bounds = array<i64: 128, 128>}, {transform_indices = @transform_2, window_bounds = array<i64: 1, 128>}, {transform_indices = @transform_3, window_bounds = array<i64: 16, 128>}]} {
    %c0_i32 = arith.constant 0 : i32
    %0 = arith.cmpi eq, %arg2, %c0_i32 : i32
    %1 = arith.extui %0 : i1 to i32
    %c0_i32_0 = arith.constant 0 : i32
    %2 = arith.cmpi ne, %1, %c0_i32_0 : i32
    scf.if %2 {
      %c0_8 = arith.constant 0 : index
      %c0_9 = arith.constant 0 : index
      %9 = vector.load %arg5[%c0_8, %c0_9] : memref<1x128xf32, #tpu.memory_space<vmem>>, vector<1x128xf32>
      %10 = vector.shape_cast %9 : vector<1x128xf32> to vector<1x128xf32>
      %11 = vector.broadcast %10 : vector<1x128xf32> to vector<16x128xf32>
      %c0_10 = arith.constant 0 : index
      %c0_11 = arith.constant 0 : index
      %12 = vector.load %arg6[%c0_10, %c0_11] : memref<16x128xf32, #tpu.memory_space<vmem>>, vector<16x128xf32>
      tpu.vector_store %arg6[%c0_10, %c0_11], %11 {strides = array<i32>} : memref<16x128xf32, #tpu.memory_space<vmem>>, vector<16x128xf32>,
    } else {
    }
    %c0 = arith.constant 0 : index
    %c0_1 = arith.constant 0 : index
    %3 = vector.load %arg6[%c0, %c0_1] : memref<16x128xf32, #tpu.memory_space<vmem>>, vector<16x128xf32>
    %c0_2 = arith.constant 0 : index
    %c0_3 = arith.constant 0 : index
    %4 = vector.load %arg3[%c0_2, %c0_3] : memref<16x128xbf16, #tpu.memory_space<vmem>>, vector<16x128xbf16>
    %c0_4 = arith.constant 0 : index
    %c0_5 = arith.constant 0 : index
    %5 = vector.load %arg4[%c0_4, %c0_5] : memref<128x128xbf16, #tpu.memory_space<vmem>>, vector<128x128xbf16>
    %cst = arith.constant dense<0.000000e+00> : vector<16x128xf32>
    %6 = tpu.matmul %4, %5, %cst {dimension_numbers = #tpu.dot_dimension_numbers<[1], [0], [0], [1], [0, 0, 1, 1], [], []>} : vector<16x128xbf16>, vector<128x128xbf16>, vector<16x128xf32> -> vector<16x128xf32>
    %7 = arith.addf %3, %6 : vector<16x128xf32>
    %c0_6 = arith.constant 0 : index
    %c0_7 = arith.constant 0 : index
    %8 = vector.load %arg6[%c0_6, %c0_7] : memref<16x128xf32, #tpu.memory_space<vmem>>, vector<16x128xf32>
    tpu.vector_store %arg6[%c0_6, %c0_7], %7 {strides = array<i32>} : memref<16x128xf32, #tpu.memory_space<vmem>>, vector<16x128xf32>,
    return
  }
  func.func @transform_0(%arg0: i32, %arg1: i32, %arg2: i32) -> (i32, i32) {
    %c0_i32 = arith.constant 0 : i32
    return %arg0, %arg2 : i32, i32
  }
  func.func @transform_1(%arg0: i32, %arg1: i32, %arg2: i32) -> (i32, i32) {
    %c0_i32 = arith.constant 0 : i32
    return %arg2, %arg1 : i32, i32
  }
  func.func @transform_2(%arg0: i32, %arg1: i32, %arg2: i32) -> (i32, i32) {
    %c0_i32 = arith.constant 0 : i32
    %c0_i32_0 = arith.constant 0 : i32
    return %c0_i32, %arg1 : i32, i32
  }
  func.func @transform_3(%arg0: i32, %arg1: i32, %arg2: i32) -> (i32, i32) {
    %c0_i32 = arith.constant 0 : i32
    return %arg0, %arg1 : i32, i32
  }
}

</mosaic_0001>

<llo_original>
// kernel: _forward.1
$region0: #{_forward.1}
  #allocation0 [shape = 'u32[]', space=smem, size = 0x4, offset = 0x4, fixed_abs, tag = 'smem constant byte address 0x4 - core index']
  #allocation1 [shape = 'u32[144,128]{1,0:T(1,128)}', space=vmem, size = 0x12000, scoped, tag = 'internal scratch']
  %s0 = inlined_call_operand.vmem [shape: bf16[4,128], index: 0, kind: input, shape index: {}]
  %s1 = inlined_call_operand.vmem [shape: bf16[128,128], index: 1, kind: input, shape index: {}]
  %s2 = inlined_call_operand.vmem [shape: f32[1,128], index: 2, kind: input, shape index: {}]
  %s3 = inlined_call_operand.hbm [shape: f32[4,8], index: 3, kind: output, shape index: {}]
  %s4 = sld [smem:[#allocation0]]
  $region26: #{_forward.1} parent=0
    _
  %s6 = ssub.s32 1, %s4
  %s7 = scalar_select 0, %s6, %s4
  $region1: #{_forward.1} parent=0
    #allocation2 [shape = 'u8[8192]{0}', space=vmem, size = 0x2000, scoped, tag = 'output window, operand 0, single buffered']
    #allocation3 [shape = 's32[1]{0}', space=sflag, size = 0x4, scoped, tag = 'scoped memory for _forward.1']
    %8 = vsyncpa [#allocation3], 0
    // Predicated region
    $region2: #{_forward.1} parent=1 // pred_check
      _
    $region3: #{_forward.1} parent=1 // pred_check_branch
      %10 = sbr.rel (0) target = $region5
    $region4: #{_forward.1} parent=1 // pred_region
      _
    $region5: #{_forward.1} parent=1 // pred_fallthru
      _
    // Predicated region
    $region6: #{_forward.1} parent=1 // pred_check
      _
    $region7: #{_forward.1} parent=1 // pred_check_branch
      %12 = sbr.rel (0) target = $region9
    $region8: #{_forward.1} parent=1 // pred_region
      _
    $region9: #{_forward.1} parent=1 // pred_fallthru
      _
    // Predicated region
    $region10: #{_forward.1} parent=1 // pred_check
      _
    $region11: #{_forward.1} parent=1 // pred_check_branch
      %14 = sbr.rel (0) target = $region13
    $region12: #{_forward.1} parent=1 // pred_region
      _
    $region13: #{_forward.1} parent=1 // pred_fallthru
      _
    %p16 = scmp.eq.s32.totalorder 0, 0
    // Predicated region
    $region14: #{_forward.1} parent=1 // pred_check
      %p17 = pneg %p16
    $region15: #{_forward.1} parent=1 // pred_check_branch
      %19 = sbr.rel (%p17) target = $region17
    $region16: #{_forward.1} parent=1 // pred_region
      %v20 = vld [vmem:[%s2] sm:$0x1]
      %v22 = vlaneseq
      %v23 = vshrl.u32 %v22, 7
      %v24 = vsub.s32 0, %v23
      %v25 = vrot.slane %v20, %v24
      %27 = vst [vmem:[#allocation2] sm:$0xff] %v25
      %28 = vst [vmem:[#allocation2 + $0x8] sm:$0xff] %v25
    $region17: #{_forward.1} parent=1 // pred_fallthru
      _
    %v29 = vld [vmem:[#allocation2] sm:$0xff]
    %v30 = vld [vmem:[#allocation2 + $0x8] sm:$0xff]
    %v31 = vld [vmem:[%s0] sm:$0x3]
    %v32 = vld [vmem:[%s0 + $0x2] sm:$0x3]
    %v33 = vld [vmem:[%s0 + $0x4] sm:$0x3]
    %v34 = vld [vmem:[%s0 + $0x6] sm:$0x3]
    %v35 = vld [vmem:[%s1] sm:$0xf]
    %v36 = vld [vmem:[%s1 + $0x4] sm:$0xf]
    %v37 = vld [vmem:[%s1 + $0x8] sm:$0xf]
    %v38 = vld [vmem:[%s1 + $0xc] sm:$0xf]
    %v39 = vld [vmem:[%s1 + $0x10] sm:$0xf]
    %v40 = vld [vmem:[%s1 + $0x14] sm:$0xf]
    %v41 = vld [vmem:[%s1 + $0x18] sm:$0xf]
    %v42 = vld [vmem:[%s1 + $0x1c] sm:$0xf]
    %v43 = vld [vmem:[%s1 + $0x20] sm:$0xf]
    %v44 = vld [vmem:[%s1 + $0x24] sm:$0xf]
    %v45 = vld [vmem:[%s1 + $0x28] sm:$0xf]
    %v46 = vld [vmem:[%s1 + $0x2c] sm:$0xf]
    %v47 = vld [vmem:[%s1 + $0x30] sm:$0xf]
    %v48 = vld [vmem:[%s1 + $0x34] sm:$0xf]
    %v49 = vld [vmem:[%s1 + $0x38] sm:$0xf]
    %v50 = vld [vmem:[%s1 + $0x3c] sm:$0xf]
    %v55 = vcombine.low %v31, %v32
    %v56 = vcombine.low %v33, %v34
    %v58 = vunpack.c.l.s4 1983009808
    %v59 = vunpack.c.0.s8 %v58
    %v60 = vlaneseq
    %v61 = vshrl.u32 %v60, 7
    %v62 = vsub.s32 %v59, %v61
    %v63 = vrot.slane %v55, %v62
    %v65 = vunpack.c.l.s4 1983009808
    %v66 = vunpack.c.0.s8 %v65
    %v67 = vlaneseq
    %v68 = vshrl.u32 %v67, 7
    %v69 = vsub.s32 %v66, %v68
    %v70 = vrot.slane %v56, %v69
    %v71 = vcombine.low %v63, %v70
    %v89 = vunpack.c.l.b16 %v35
    %v90 = vunpack.c.l.b16 %v36
    %v91 = vunpack.c.l.b16 %v37
    %v92 = vunpack.c.l.b16 %v38
    %v93 = vunpack.c.l.b16 %v39
    %v94 = vunpack.c.l.b16 %v40
    %v95 = vunpack.c.l.b16 %v41
    %v96 = vunpack.c.l.b16 %v42
    %v97 = vunpack.c.l.b16 %v43
    %v98 = vunpack.c.l.b16 %v44
    %v99 = vunpack.c.l.b16 %v45
    %v100 = vunpack.c.l.b16 %v46
    %v101 = vunpack.c.l.b16 %v47
    %v102 = vunpack.c.l.b16 %v48
    %v103 = vunpack.c.l.b16 %v49
    %v104 = vunpack.c.l.b16 %v50
    %v105 = vpack.c.b16 %v90, %v89
    %v106 = vpack.c.b16 %v92, %v91
    %v107 = vpack.c.b16 %v94, %v93
    %v108 = vpack.c.b16 %v96, %v95
    %v109 = vpack.c.b16 %v98, %v97
    %v110 = vpack.c.b16 %v100, %v99
    %v111 = vpack.c.b16 %v102, %v101
    %v112 = vpack.c.b16 %v104, %v103
    %121 = vmatprep.subr.bf16.mxu0 0
    %122 = vmatpush1.bf16.msra.mxu0 %v105
    %123 = vmatprep.subr.bf16.mxu0 0
    %124 = vmatpush1.bf16.msra.mxu0 %v106
    %125 = vmatprep.subr.bf16.mxu0 0
    %126 = vmatpush1.bf16.msra.mxu0 %v107
    %127 = vmatprep.subr.bf16.mxu0 0
    %128 = vmatpush1.bf16.msra.mxu0 %v108
    %129 = vmatprep.subr.bf16.mxu0 0
    %130 = vmatpush1.bf16.msra.mxu0 %v109
    %131 = vmatprep.subr.bf16.mxu0 0
    %132 = vmatpush1.bf16.msra.mxu0 %v110
    %133 = vmatprep.subr.bf16.mxu0 0
    %134 = vmatpush1.bf16.msra.mxu0 %v111
    %135 = vmatprep.subr.bf16.mxu0 0
    %136 = vmatpush1.bf16.msra.mxu0 %v112
    %137 = vmatprep.subr.bf16.mxu0 0
    %138 = vmatpush1.bf16.msra.mxu0 0
    %139 = vmatprep.subr.bf16.mxu0 0
    %140 = vmatpush1.bf16.msra.mxu0 0
    %141 = vmatprep.subr.bf16.mxu0 0
    %142 = vmatpush1.bf16.msra.mxu0 0
    %143 = vmatprep.subr.bf16.mxu0 0
    %144 = vmatpush1.bf16.msra.mxu0 0
    %145 = vmatprep.subr.bf16.mxu0 0
    %146 = vmatpush1.bf16.msra.mxu0 0
    %147 = vmatprep.subr.bf16.mxu0 0
    %148 = vmatpush1.bf16.msra.mxu0 0
    %149 = vmatprep.subr.bf16.mxu0 0
    %150 = vmatpush1.bf16.msra.mxu0 0
    %151 = vmatprep.subr.bf16.mxu0 0
    %152 = vmatpush1.bf16.msra.mxu0 0
    %153 = vmatprep.mubr.bf16.mxu0 0
    %154 = vmatmul.mubr.bf16.gmra.mrb[0].mxu0 %v71
    %v155 = vpop.f32.mrb[0].mxu0
    %v156 = vadd.f32 0.0, %v155
    %v157 = vpop.f32.mrb[0].mxu0
    %v158 = vpop.f32.mrb[0].mxu0
    %v159 = vadd.f32 0.0, %v158
    %v160 = vpop.f32.mrb[0].mxu0
    %161 = vdwg.mxu0
    %v162 = vadd.f32 %v29, %v156
    %v163 = vadd.f32 %v30, %v159
    %164 = vst [vmem:[#allocation2] sm:$0xff] %v162
    %165 = vst [vmem:[#allocation2 + $0x8] sm:$0xff] %v163
    // Predicated region
    $region18: #{_forward.1} parent=1 // pred_check
      _
    $region19: #{_forward.1} parent=1 // pred_check_branch
      %167 = sbr.rel (0) target = $region21
    $region20: #{_forward.1} parent=1 // pred_region
      %s169 = ssub.s32 256, 64
      %170 = vsyncadd [#allocation3], %s169
      %s171 = sshll.u32 [#allocation2], 4
      %s172 = int_to_ptr.vmem [resolvable:$true] %s171
      %177 = dma.vmem_to_hbm [thread:$0]  %s172, 64, %s3, [#allocation3], 64, 64, 4
    $region21: #{_forward.1} parent=1 // pred_fallthru
      _
    // Predicated region
    $region22: #{_forward.1} parent=1 // pred_check
      _
    $region23: #{_forward.1} parent=1 // pred_check_branch
      %179 = sbr.rel (0) target = $region25
    $region24: #{_forward.1} parent=1 // pred_region
      %180 = dma.done [#allocation3], 256
    $region25: #{_forward.1} parent=1 // pred_fallthru
      _
    %181 = vsyncpa [#allocation3], 1

</llo_original>
